<compile_context>
chip_gen: v6e
topology: v6e:2x2x1
jax: 0.10.0
libtpu: 0.0.40
codegen_flags: <defaults>
</compile_context>

<pallas_src>
import functools
from typing import NamedTuple

import jax
import jax.numpy as jnp
from jax.experimental import pallas as pl
from jax.experimental.pallas import tpu as pltpu


def _round_up(x: int, m: int) -> int:
    return ((x + m - 1) // m) * m


# --------------------------------------------------------------------------
# Kernel
# --------------------------------------------------------------------------
def _ardca_forward_kernel(x_ref, jhi_ref, jlo_ref, h_ref, out_ref, *,
                          beta: float, q: int, mask_pad: bool):
    """One sample-tile of the arDCA forward pass.

    x_ref:   (TN, K)  bf16  flattened one-hot context tile (exact in bf16)
    jhi_ref: (K, QP)  bf16  hi half of the f32 coupling slab J_ar.T (lane-padded)
    jlo_ref: (K, QP)  bf16  lo half (f32 slab minus hi), restores ~f32 accuracy
    h_ref:   (1, QP)  f32   bias for site residue_idx; padded lanes hold -inf
                            when beta > 0, else 0 (masked in-kernel)
    out_ref: (TN, QP) f32   softmax probabilities (padded lanes exactly 0)
    """
    x = x_ref[...]                                    # stays bf16 -> native MXU rate
    jhi = jhi_ref[...]
    jlo = jlo_ref[...]

    # logits = h + X @ J_ar.T : two bf16xbf16 MXU matmuls with f32 accumulation.
    acc = jnp.dot(x, jhi, preferred_element_type=jnp.float32)
    acc = acc + jnp.dot(x, jlo, preferred_element_type=jnp.float32)
    logits = acc + h_ref[...]

    if beta != 1.0:                                   # static (compile-time) branch
        logits = jnp.float32(beta) * logits

    if mask_pad:
        # Only needed for beta <= 0; for beta > 0 the -inf bias padding already
        # zeroes the padded lanes with no per-tile iota/compare/select.
        lane = jax.lax.broadcasted_iota(jnp.int32, logits.shape, 1)
        logits = jnp.where(lane < q, logits, -jnp.inf)

    # Numerically stable softmax over the (padded) lane axis.
    m = jnp.max(logits, axis=-1, keepdims=True)
    e = jnp.exp(logits - m)                           # exp(-inf) == 0 on padded lanes
    denom = jnp.sum(e, axis=-1, keepdims=True)
    # EUP approx reciprocal + one Newton refinement (restores ~f32 accuracy,
    # moves the divide off the VALU slot for free).
    r = pl.reciprocal(denom, approx=True)
    r = r * (2.0 - denom * r)
    out_ref[...] = (e * r).astype(out_ref.dtype)


# --------------------------------------------------------------------------
# Parameter pre-layout (hoist out of AR loops)
# --------------------------------------------------------------------------
def prepare_couplings(J):
    """Pre-layout J once: (L, q_out, L, q_in) -> (L, L, q_in, q_out).

    After this, J_pre[residue_idx, :residue_idx].reshape(residue_idx*q, q) is a
    contiguous (K, q) view equal to J_ar.T, so per-site slab prep does no
    transpose/copy in HBM.
    """
    return jnp.transpose(J, (0, 2, 3, 1))


class SiteSlab(NamedTuple):
    """Per-(residue_idx, beta) parameters, ready for the Pallas kernel.

    Build once per site (hoist/cache outside an AR sampling loop) and reuse.
    """
    j_hi: jax.Array        # (K, QP) bf16, hi half of J_ar.T, lane-padded with 0
    j_lo: jax.Array        # (K, QP) bf16, lo half (f32 slab minus hi)
    h_eff: jax.Array       # (1, QP) f32 bias; padded lanes -inf when beta > 0
    residue_idx: int
    q: int
    qp: int
    beta: float
    mask_pad: bool         # kernel masks padded lanes (only when beta <= 0)


def prepare_site_slab(J_pre, h, residue_idx, beta=1.0):
    """Slice / split / pad the couplings for one output site.

    beta must be a compile-time Python float (traced beta would raise here).
    """
    beta = float(beta)
    residue_idx = int(residue_idx)
    _, q = h.shape
    K = residue_idx * q
    QP = max(128, _round_up(q, 128))                  # lane-dense output width
    pad = QP - q

    # Contiguous (K, q) view of J_ar.T thanks to prepare_couplings' layout.
    j_f32 = J_pre[residue_idx, :residue_idx].reshape(K, q).astype(jnp.float32)
    # hi/lo bf16 split: with an exact one-hot LHS the two bf16 matmuls reproduce
    # the f32 product to ~2^-16 relative error (safe at trained-scale J).
    j_hi = j_f32.astype(jnp.bfloat16)
    j_lo = (j_f32 - j_hi.astype(jnp.float32)).astype(jnp.bfloat16)
    if pad:
        j_hi = jnp.pad(j_hi, ((0, 0), (0, pad)))
        j_lo = jnp.pad(j_lo, ((0, 0), (0, pad)))

    h_i = h[residue_idx].astype(jnp.float32)
    mask_pad = bool(pad) and beta <= 0.0
    if pad:
        # Padded J columns are zero, so padded logits equal the padded bias;
        # -inf there makes exp() an exact 0 with no in-kernel mask (beta > 0).
        fill = float("-inf") if beta > 0.0 else 0.0
        h_i = jnp.pad(h_i, (0, pad), constant_values=fill)
    h_i = h_i.reshape(1, QP)

    return SiteSlab(j_hi, j_lo, h_i, residue_idx, q, QP, beta, mask_pad)


# --------------------------------------------------------------------------
# Chip-aware tiling / VMEM budgeting
# --------------------------------------------------------------------------
def _vmem_budget_bytes() -> int:
    try:
        kind = jax.devices()[0].device_kind.lower()
    except Exception:
        kind = ""
    if "v7" in kind or "7x" in kind:
        return 48 << 20        # 64 MiB physical VMEM per TensorCore on v7x
    if kind:
        return 96 << 20        # v5e / v6e / v5p: 128 MiB physical
    return 48 << 20            # unknown backend: stay conservative


def _footprint_bytes(tn: int, K: int, QP: int) -> int:
    x_bytes = 2 * tn * K * 2        # streamed X tile, bf16, double-buffered
    j_bytes = 2 * K * QP * 2        # resident hi/lo slabs, single-buffered
    h_bytes = QP * 4                # resident bias
    out_bytes = 2 * tn * QP * 4     # output tile, f32, double-buffered
    work_bytes = 4 * tn * QP * 4    # in-kernel f32 intermediates (logits/exp/...)
    return x_bytes + j_bytes + h_bytes + out_bytes + work_bytes


def _pick_block_n(n_samples: int, K: int, QP: int, budget: int,
                  requested=None) -> int:
    cap = _round_up(n_samples, 8)
    if requested is not None:
        return max(8, min(_round_up(int(requested), 8), cap))
    resident = 2 * K * QP * 2 + QP * 4
    per_row = 2 * K * 2 + 2 * QP * 4 + 4 * QP * 4
    avail = int(budget * 0.7) - resident
    tn = (max(avail, 0) // max(per_row, 1)) // 8 * 8
    return max(8, min(tn, cap, 1024))


def _grid_semantics(num_blocks: int):
    # Sample axis is embarrassingly parallel. On multi-TensorCore chips (v7x)
    # request CORE_PARALLEL so both cores split the tiles; "parallel" elsewhere.
    try:
        kind = jax.devices()[0].device_kind.lower()
    except Exception:
        kind = ""
    multi_core = ("v7" in kind) or ("7x" in kind)
    if multi_core and num_blocks >= 2 and hasattr(pltpu, "CORE_PARALLEL"):
        return (pltpu.CORE_PARALLEL,)
    return ("parallel",)


# --------------------------------------------------------------------------
# Forward wrappers
# --------------------------------------------------------------------------
def ardca_forward_with_slab(X, slab: SiteSlab, block_n=None):
    """Run the Pallas forward given a pre-built per-site slab."""
    if X.ndim != 3:
        raise ValueError("X must be a 3D tensor")
    n_samples, residue_idx, q_x = X.shape
    if residue_idx != slab.residue_idx or q_x != slab.q:
        raise ValueError("X shape does not match the prepared site slab")

    q, QP = slab.q, slab.qp
    K = residue_idx * q

    # Flatten the one-hot context; bf16 is exact for 0/1 and halves HBM traffic.
    # TODO(synk): for AR sampling loops, stream int32 token indices and build
    # the one-hot tile (or gather slab rows) in-kernel to cut HBM ~q/2x more.
    X_flat = X.reshape(n_samples, K).astype(jnp.bfloat16)

    budget = _vmem_budget_bytes()
    tn = _pick_block_n(n_samples, K, QP, budget, requested=block_n)
    n_pad = _round_up(n_samples, tn)
    if n_pad != n_samples:
        X_flat = jnp.pad(X_flat, ((0, n_pad - n_samples), (0, 0)))
    grid = (n_pad // tn,)

    vmem_limit = int(min(max(_footprint_bytes(tn, K, QP) * 1.25 + (2 << 20),
                             32 << 20), 112 << 20))

    kernel = functools.partial(_ardca_forward_kernel, beta=slab.beta, q=q,
                               mask_pad=slab.mask_pad)

    def _resident_spec(shape, single_buffered):
        if single_buffered:
            return pl.BlockSpec(shape, lambda i: (0, 0),
                                pipeline_mode=pl.Buffered(1))
        return pl.BlockSpec(shape, lambda i: (0, 0))

    def call(resident_single_buffered: bool):
        return pl.pallas_call(
            kernel,
            out_shape=jax.ShapeDtypeStruct((n_pad, QP), jnp.float32),
            grid_spec=pltpu.PrefetchScalarGridSpec(
                num_scalar_prefetch=0,
                grid=grid,
                in_specs=[
                    # Streamed sample tile (double-buffered by the pipeline).
                    pl.BlockSpec((tn, K), lambda i: (i, 0)),
                    # Resident coupling slabs + bias: constant index maps,
                    # single-buffered to halve their VMEM footprint.
                    _resident_spec((K, QP), resident_single_buffered),
                    _resident_spec((K, QP), resident_single_buffered),
                    _resident_spec((1, QP), resident_single_buffered),
                ],
                out_specs=pl.BlockSpec((tn, QP), lambda i: (i, 0)),
            ),
            compiler_params=pltpu.CompilerParams(
                dimension_semantics=_grid_semantics(grid[0]),
                vmem_limit_bytes=vmem_limit,
            ),
        )(X_flat, slab.j_hi, slab.j_lo, slab.h_eff)

    try:
        out = call(resident_single_buffered=True)
    except Exception:
        # Fallback if this jax build rejects pl.Buffered(1) on a pallas_call
        # BlockSpec: identical semantics, only costs extra VMEM for the slab.
        out = call(resident_single_buffered=False)

    # Drop the N padding rows and the padded lanes (which are exactly 0).
    return out[:n_samples, :q]


def ardca_forward(X, h, J_pre, beta=1.0, block_n=None):
    """Pallas implementation of arDCA.forward.

    Args:
      X: (n_samples, residue_idx, q) one-hot context, residue_idx < L.
      h: (L, q) bias parameters.
      J_pre: (L, L, q, q) pre-laid-out couplings from `prepare_couplings(J)`.
      beta: inverse temperature; must be a compile-time Python float.
      block_n: optional sample-tile override (default: auto from VMEM budget).

    Returns:
      (n_samples, q) probabilities of the next token.
    """
    if X.ndim != 3:
        raise ValueError("X must be a 3D tensor")
    L, q = h.shape
    n_samples, residue_idx, q_x = X.shape
    if q_x != q:
        raise ValueError("X and h disagree on q")
    if residue_idx >= L:
        raise ValueError("X must have a second dimension smaller than L")
    if residue_idx < 1:
        raise ValueError("X must contain at least one context site")

    # TODO(synk): for AR sampling, cache the slab per residue_idx and batch
    # several output sites per pallas_call so the output fills 256+ MXU lanes.
    slab = prepare_site_slab(J_pre, h, residue_idx, beta=beta)
    return ardca_forward_with_slab(X, slab, block_n=block_n)


# --------------------------------------------------------------------------
# Pure-JAX reference + param init (for the self-check)
# --------------------------------------------------------------------------
def ardca_forward_ref(X, h, J, beta=1.0):
    """Pure-JAX reference mirroring the PyTorch forward (original J layout)."""
    n_samples, residue_idx, _ = X.shape
    q = h.shape[1]
    J_ar = J[residue_idx, :, :residue_idx, :].reshape(q, -1)
    X_ar = X.reshape(n_samples, -1)
    logit = h[residue_idx] + jnp.einsum("ij,nj->ni", J_ar, X_ar)
    return jax.nn.softmax(beta * logit, axis=-1)


def init_ardca_params(key, L, q):
    """Deterministic parameter init matching arDCA.__init__ shapes."""
    k_h, k_J = jax.random.split(key)
    h = jax.random.normal(k_h, (L, q), dtype=jnp.float32) * 1e-4
    J = jax.random.normal(k_J, (L, q, L, q), dtype=jnp.float32) * 1e-4
    # remove_autocorr: zero out self-interactions J[i, :, i, :] = 0
    eye = jnp.eye(L, dtype=jnp.float32)            # (L, L)
    mask = 1.0 - eye[:, None, :, None]             # (L, 1, L, 1)
    J = J * mask
    return h, J


if __name__ == "__main__":
    # Small shapes: L=16 sites, q=8 states, batch of 32 sequences with a
    # context of residue_idx=8 already-generated sites.
    L, q = 16, 8
    n_samples, residue_idx = 32, 8

    key = jax.random.PRNGKey(0)
    k_params, k_tok = jax.random.split(key)
    h, J = init_ardca_params(k_params, L, q)
    J_pre = prepare_couplings(J)   # one-time pre-layout of the couplings

    # Deterministic one-hot context X: (n_samples, residue_idx, q)
    tokens = jax.random.randint(k_tok, (n_samples, residue_idx), 0, q)
    X = jax.nn.one_hot(tokens, q, dtype=jnp.float32)

    # beta == 1 path (no beta scaling, -inf bias padding).
    prob = jax.block_until_ready(ardca_forward(X, h, J_pre, beta=1.0))
    ref = ardca_forward_ref(X, h, J, beta=1.0)
    assert prob.shape == (n_samples, q)
    assert jnp.allclose(prob, ref, atol=1e-5, rtol=1e-5)
    assert jnp.allclose(jnp.sum(prob, axis=-1), 1.0, atol=1e-5)

    # beta != 1 path (post-matmul scale, still -inf bias padding).
    prob2 = jax.block_until_ready(ardca_forward(X, h, J_pre, beta=0.5))
    ref2 = ardca_forward_ref(X, h, J, beta=0.5)
    assert jnp.allclose(prob2, ref2, atol=1e-5, rtol=1e-5)

    print("KERNEL_OK")
</pallas_src>

<mosaic_0001>
module attributes {stable_mosaic.version = 11 : i64} {
  func.func @_ardca_forward_kernel(%arg0: i32, %arg1: memref<32x64xbf16, #tpu.memory_space<vmem>>, %arg2: memref<64x128xbf16, #tpu.memory_space<vmem>>, %arg3: memref<64x128xbf16, #tpu.memory_space<vmem>>, %arg4: memref<1x128xf32, #tpu.memory_space<vmem>>, %arg5: memref<32x128xf32, #tpu.memory_space<vmem>>) attributes {dimension_semantics = [#tpu.dimension_semantics<parallel>], iteration_bounds = array<i64: 1>, scalar_prefetch = 0 : i64, scratch_operands = 0 : i64, tpu.core_type = #tpu.core_type<tc>, window_params = [{transform_indices = @transform_0, window_bounds = array<i64: 32, 64>}, {pipeline_mode = #tpu.pipeline_mode<synchronous>, transform_indices = @transform_1, window_bounds = array<i64: 64, 128>}, {pipeline_mode = #tpu.pipeline_mode<synchronous>, transform_indices = @transform_2, window_bounds = array<i64: 64, 128>}, {pipeline_mode = #tpu.pipeline_mode<synchronous>, transform_indices = @transform_3, window_bounds = array<i64: 1, 128>}, {transform_indices = @transform_4, window_bounds = array<i64: 32, 128>}]} {
    %c0 = arith.constant 0 : index
    %c0_0 = arith.constant 0 : index
    %0 = vector.load %arg1[%c0, %c0_0] : memref<32x64xbf16, #tpu.memory_space<vmem>>, vector<32x64xbf16>
    %c0_1 = arith.constant 0 : index
    %c0_2 = arith.constant 0 : index
    %1 = vector.load %arg2[%c0_1, %c0_2] : memref<64x128xbf16, #tpu.memory_space<vmem>>, vector<64x128xbf16>
    %c0_3 = arith.constant 0 : index
    %c0_4 = arith.constant 0 : index
    %2 = vector.load %arg3[%c0_3, %c0_4] : memref<64x128xbf16, #tpu.memory_space<vmem>>, vector<64x128xbf16>
    %cst = arith.constant dense<0.000000e+00> : vector<32x128xf32>
    %3 = tpu.matmul %0, %1, %cst {dimension_numbers = #tpu.dot_dimension_numbers<[1], [0], [0], [1], [0, 0, 1, 1], [], []>} : vector<32x64xbf16>, vector<64x128xbf16>, vector<32x128xf32> -> vector<32x128xf32>
    %cst_5 = arith.constant dense<0.000000e+00> : vector<32x128xf32>
    %4 = tpu.matmul %0, %2, %cst_5 {dimension_numbers = #tpu.dot_dimension_numbers<[1], [0], [0], [1], [0, 0, 1, 1], [], []>} : vector<32x64xbf16>, vector<64x128xbf16>, vector<32x128xf32> -> vector<32x128xf32>
    %5 = arith.addf %3, %4 : vector<32x128xf32>
    %c0_6 = arith.constant 0 : index
    %c0_7 = arith.constant 0 : index
    %6 = vector.load %arg4[%c0_6, %c0_7] : memref<1x128xf32, #tpu.memory_space<vmem>>, vector<1x128xf32>
    %7 = vector.broadcast %6 : vector<1x128xf32> to vector<32x128xf32>
    %8 = arith.addf %5, %7 : vector<32x128xf32>
    %cst_8 = arith.constant dense<0xFF800000> : vector<32xf32>
    %9 = vector.multi_reduction <maximumf>, %8, %cst_8 [1] : vector<32x128xf32> to vector<32xf32>
    %10 = vector.shape_cast %9 : vector<32xf32> to vector<32x1xf32>
    %11 = vector.broadcast %10 : vector<32x1xf32> to vector<32x128xf32>
    %12 = arith.subf %8, %11 : vector<32x128xf32>
    %13 = math.exp %12 : vector<32x128xf32>
    %cst_9 = arith.constant dense<0.000000e+00> : vector<32xf32>
    %14 = vector.multi_reduction <add>, %13, %cst_9 [1] : vector<32x128xf32> to vector<32xf32>
    %15 = vector.shape_cast %14 : vector<32xf32> to vector<32x1xf32>
    %16 = tpu.reciprocal %15 {approx = true} : vector<32x1xf32> -> vector<32x1xf32>
    %17 = arith.mulf %15, %16 : vector<32x1xf32>
    %cst_10 = arith.constant 2.000000e+00 : f32
    %18 = vector.broadcast %cst_10 : f32 to vector<32x1xf32>
    %19 = arith.subf %18, %17 : vector<32x1xf32>
    %20 = arith.mulf %16, %19 : vector<32x1xf32>
    %21 = vector.broadcast %20 : vector<32x1xf32> to vector<32x128xf32>
    %22 = arith.mulf %13, %21 : vector<32x128xf32>
    %c0_11 = arith.constant 0 : index
    %c0_12 = arith.constant 0 : index
    %23 = vector.load %arg5[%c0_11, %c0_12] : memref<32x128xf32, #tpu.memory_space<vmem>>, vector<32x128xf32>
    tpu.vector_store %arg5[%c0_11, %c0_12], %22 {strides = array<i32>} : memref<32x128xf32, #tpu.memory_space<vmem>>, vector<32x128xf32>,
    return
  }
  func.func @transform_0(%arg0: i32) -> (i32, i32) {
    %c0_i32 = arith.constant 0 : i32
    %c0_i32_0 = arith.constant 0 : i32
    return %arg0, %c0_i32 : i32, i32
  }
  func.func @transform_1(%arg0: i32) -> (i32, i32) {
    %c0_i32 = arith.constant 0 : i32
    %c0_i32_0 = arith.constant 0 : i32
    %c0_i32_1 = arith.constant 0 : i32
    return %c0_i32, %c0_i32_0 : i32, i32
  }
  func.func @transform_2(%arg0: i32) -> (i32, i32) {
    %c0_i32 = arith.constant 0 : i32
    %c0_i32_0 = arith.constant 0 : i32
    %c0_i32_1 = arith.constant 0 : i32
    return %c0_i32, %c0_i32_0 : i32, i32
  }
  func.func @transform_3(%arg0: i32) -> (i32, i32) {
    %c0_i32 = arith.constant 0 : i32
    %c0_i32_0 = arith.constant 0 : i32
    %c0_i32_1 = arith.constant 0 : i32
    return %c0_i32, %c0_i32_0 : i32, i32
  }
  func.func @transform_4(%arg0: i32) -> (i32, i32) {
    %c0_i32 = arith.constant 0 : i32
    %c0_i32_0 = arith.constant 0 : i32
    return %arg0, %c0_i32 : i32, i32
  }
}

module attributes {stable_mosaic.version = 11 : i64} {
  func.func @_ardca_forward_kernel(%arg0: i32, %arg1: memref<32x64xbf16, #tpu.memory_space<vmem>>, %arg2: memref<64x128xbf16, #tpu.memory_space<vmem>>, %arg3: memref<64x128xbf16, #tpu.memory_space<vmem>>, %arg4: memref<1x128xf32, #tpu.memory_space<vmem>>, %arg5: memref<32x128xf32, #tpu.memory_space<vmem>>) attributes {dimension_semantics = [#tpu.dimension_semantics<parallel>], iteration_bounds = array<i64: 1>, scalar_prefetch = 0 : i64, scratch_operands = 0 : i64, tpu.core_type = #tpu.core_type<tc>, window_params = [{transform_indices = @transform_0, window_bounds = array<i64: 32, 64>}, {pipeline_mode = #tpu.pipeline_mode<synchronous>, transform_indices = @transform_1, window_bounds = array<i64: 64, 128>}, {pipeline_mode = #tpu.pipeline_mode<synchronous>, transform_indices = @transform_2, window_bounds = array<i64: 64, 128>}, {pipeline_mode = #tpu.pipeline_mode<synchronous>, transform_indices = @transform_3, window_bounds = array<i64: 1, 128>}, {transform_indices = @transform_4, window_bounds = array<i64: 32, 128>}]} {
    %c0 = arith.constant 0 : index
    %c0_0 = arith.constant 0 : index
    %0 = vector.load %arg1[%c0, %c0_0] : memref<32x64xbf16, #tpu.memory_space<vmem>>, vector<32x64xbf16>
    %c0_1 = arith.constant 0 : index
    %c0_2 = arith.constant 0 : index
    %1 = vector.load %arg2[%c0_1, %c0_2] : memref<64x128xbf16, #tpu.memory_space<vmem>>, vector<64x128xbf16>
    %c0_3 = arith.constant 0 : index
    %c0_4 = arith.constant 0 : index
    %2 = vector.load %arg3[%c0_3, %c0_4] : memref<64x128xbf16, #tpu.memory_space<vmem>>, vector<64x128xbf16>
    %cst = arith.constant dense<0.000000e+00> : vector<32x128xf32>
    %3 = tpu.matmul %0, %1, %cst {dimension_numbers = #tpu.dot_dimension_numbers<[1], [0], [0], [1], [0, 0, 1, 1], [], []>} : vector<32x64xbf16>, vector<64x128xbf16>, vector<32x128xf32> -> vector<32x128xf32>
    %cst_5 = arith.constant dense<0.000000e+00> : vector<32x128xf32>
    %4 = tpu.matmul %0, %2, %cst_5 {dimension_numbers = #tpu.dot_dimension_numbers<[1], [0], [0], [1], [0, 0, 1, 1], [], []>} : vector<32x64xbf16>, vector<64x128xbf16>, vector<32x128xf32> -> vector<32x128xf32>
    %5 = arith.addf %3, %4 : vector<32x128xf32>
    %c0_6 = arith.constant 0 : index
    %c0_7 = arith.constant 0 : index
    %6 = vector.load %arg4[%c0_6, %c0_7] : memref<1x128xf32, #tpu.memory_space<vmem>>, vector<1x128xf32>
    %7 = vector.broadcast %6 : vector<1x128xf32> to vector<32x128xf32>
    %8 = arith.addf %5, %7 : vector<32x128xf32>
    %cst_8 = arith.constant dense<0xFF800000> : vector<32xf32>
    %9 = vector.multi_reduction <maximumf>, %8, %cst_8 [1] : vector<32x128xf32> to vector<32xf32>
    %10 = vector.shape_cast %9 : vector<32xf32> to vector<32x1xf32>
    %11 = vector.broadcast %10 : vector<32x1xf32> to vector<32x128xf32>
    %12 = arith.subf %8, %11 : vector<32x128xf32>
    %13 = math.exp %12 : vector<32x128xf32>
    %cst_9 = arith.constant dense<0.000000e+00> : vector<32xf32>
    %14 = vector.multi_reduction <add>, %13, %cst_9 [1] : vector<32x128xf32> to vector<32xf32>
    %15 = vector.shape_cast %14 : vector<32xf32> to vector<32x1xf32>
    %16 = tpu.reciprocal %15 {approx = true} : vector<32x1xf32> -> vector<32x1xf32>
    %17 = arith.mulf %15, %16 : vector<32x1xf32>
    %cst_10 = arith.constant 2.000000e+00 : f32
    %18 = vector.broadcast %cst_10 : f32 to vector<32x1xf32>
    %19 = arith.subf %18, %17 : vector<32x1xf32>
    %20 = arith.mulf %16, %19 : vector<32x1xf32>
    %21 = vector.broadcast %20 : vector<32x1xf32> to vector<32x128xf32>
    %22 = arith.mulf %13, %21 : vector<32x128xf32>
    %c0_11 = arith.constant 0 : index
    %c0_12 = arith.constant 0 : index
    %23 = vector.load %arg5[%c0_11, %c0_12] : memref<32x128xf32, #tpu.memory_space<vmem>>, vector<32x128xf32>
    tpu.vector_store %arg5[%c0_11, %c0_12], %22 {strides = array<i32>} : memref<32x128xf32, #tpu.memory_space<vmem>>, vector<32x128xf32>,
    return
  }
  func.func @transform_0(%arg0: i32) -> (i32, i32) {
    %c0_i32 = arith.constant 0 : i32
    %c0_i32_0 = arith.constant 0 : i32
    return %arg0, %c0_i32 : i32, i32
  }
  func.func @transform_1(%arg0: i32) -> (i32, i32) {
    %c0_i32 = arith.constant 0 : i32
    %c0_i32_0 = arith.constant 0 : i32
    %c0_i32_1 = arith.constant 0 : i32
    return %c0_i32, %c0_i32_0 : i32, i32
  }
  func.func @transform_2(%arg0: i32) -> (i32, i32) {
    %c0_i32 = arith.constant 0 : i32
    %c0_i32_0 = arith.constant 0 : i32
    %c0_i32_1 = arith.constant 0 : i32
    return %c0_i32, %c0_i32_0 : i32, i32
  }
  func.func @transform_3(%arg0: i32) -> (i32, i32) {
    %c0_i32 = arith.constant 0 : i32
    %c0_i32_0 = arith.constant 0 : i32
    %c0_i32_1 = arith.constant 0 : i32
    return %c0_i32, %c0_i32_0 : i32, i32
  }
  func.func @transform_4(%arg0: i32) -> (i32, i32) {
    %c0_i32 = arith.constant 0 : i32
    %c0_i32_0 = arith.constant 0 : i32
    return %arg0, %c0_i32 : i32, i32
  }
}

</mosaic_0001>

<llo_original>
// kernel: tpu_custom_call.1
$region0: #{tpu_custom_call.1}
  #allocation0 [shape = 'u32[]', space=smem, size = 0x4, offset = 0x4, fixed_abs, tag = 'smem constant byte address 0x4 - core index']
  #allocation1 [shape = 'u32[144,128]{1,0:T(1,128)}', space=vmem, size = 0x12000, scoped, tag = 'internal scratch']
  %s0 = inlined_call_operand.hbm [shape: bf16[32,64], index: 0, kind: input, shape index: {}]
  %s1 = inlined_call_operand.hbm [shape: bf16[64,128], index: 1, kind: input, shape index: {}]
  %s2 = inlined_call_operand.hbm [shape: bf16[64,128], index: 2, kind: input, shape index: {}]
  %s3 = inlined_call_operand.vmem [shape: f32[1,128], index: 3, kind: input, shape index: {}]
  %s4 = inlined_call_operand.hbm [shape: f32[32,128], index: 4, kind: output, shape index: {}]
  %s5 = sld [smem:[#allocation0]]
  $region38: #{tpu_custom_call.1} parent=0
    _
  %s7 = ssub.s32 1, %s5
  %s8 = scalar_select 0, %s7, %s5
  $region1: #{tpu_custom_call.1} parent=0
    #allocation2 [shape = 'u8[8192]{0}', space=vmem, size = 0x2000, scoped, tag = 'input window, operand 0, single buffered']
    #allocation3 [shape = 's32[1]{0}', space=sflag, size = 0x4, scoped, tag = 'scoped memory for tpu_custom_call.1']
    #allocation4 [shape = 's32[1]{0}', space=sflag, size = 0x4, scoped, tag = 'scoped memory for tpu_custom_call.1']
    #allocation5 [shape = 'u8[16384]{0}', space=vmem, size = 0x4000, scoped, tag = 'input window, operand 1, single buffered']
    #allocation6 [shape = 's32[1]{0}', space=sflag, size = 0x4, scoped, tag = 'scoped memory for tpu_custom_call.1']
    #allocation7 [shape = 'u8[16384]{0}', space=vmem, size = 0x4000, scoped, tag = 'input window, operand 2, single buffered']
    #allocation8 [shape = 'u8[16384]{0}', space=vmem, size = 0x4000, scoped, tag = 'output window, operand 0, single buffered']
    %9 = vsyncpa [#allocation3], 0
    %10 = vsyncpa [#allocation6], 0
    %11 = vsyncpa [#allocation4], 0
    // Predicated region
    $region2: #{tpu_custom_call.1} parent=1 // pred_check
      _
    $region3: #{tpu_custom_call.1} parent=1 // pred_check_branch
      %13 = sbr.rel (0) target = $region5
    $region4: #{tpu_custom_call.1} parent=1 // pred_region
      %s15 = ssub.s32 256, 256
      %16 = vsyncadd [#allocation3], %s15
      %s17 = sshll.u32 [#allocation2], 4
      %s18 = int_to_ptr.vmem [resolvable:$true] %s17
      %23 = dma.hbm_to_vmem [thread:$0]  %s0, 256, %s18, [#allocation3], 64, 64, 4
    $region5: #{tpu_custom_call.1} parent=1 // pred_fallthru
      _
    // Predicated region
    $region6: #{tpu_custom_call.1} parent=1 // pred_check
      _
    $region7: #{tpu_custom_call.1} parent=1 // pred_check_branch
      %25 = sbr.rel (0) target = $region9
    $region8: #{tpu_custom_call.1} parent=1 // pred_region
      %s27 = ssub.s32 512, 512
      %28 = vsyncadd [#allocation6], %s27
      %s29 = sshll.u32 [#allocation5], 4
      %s30 = int_to_ptr.vmem [resolvable:$true] %s29
      %35 = dma.hbm_to_vmem [thread:$0]  %s1, 512, %s30, [#allocation6], 64, 64, 4
    $region9: #{tpu_custom_call.1} parent=1 // pred_fallthru
      _
    // Predicated region
    $region10: #{tpu_custom_call.1} parent=1 // pred_check
      _
    $region11: #{tpu_custom_call.1} parent=1 // pred_check_branch
      %37 = sbr.rel (0) target = $region13
    $region12: #{tpu_custom_call.1} parent=1 // pred_region
      %s39 = ssub.s32 512, 512
      %40 = vsyncadd [#allocation6], %s39
      %s41 = sshll.u32 [#allocation7], 4
      %s42 = int_to_ptr.vmem [resolvable:$true] %s41
      %47 = dma.hbm_to_vmem [thread:$0]  %s2, 512, %s42, [#allocation6], 64, 64, 4
    $region13: #{tpu_custom_call.1} parent=1 // pred_fallthru
      _
    // Predicated region
    $region14: #{tpu_custom_call.1} parent=1 // pred_check
      _
    $region15: #{tpu_custom_call.1} parent=1 // pred_check_branch
      %49 = sbr.rel (0) target = $region17
    $region16: #{tpu_custom_call.1} parent=1 // pred_region
      _
    $region17: #{tpu_custom_call.1} parent=1 // pred_fallthru
      _
    // Predicated region
    $region18: #{tpu_custom_call.1} parent=1 // pred_check
      _
    $region19: #{tpu_custom_call.1} parent=1 // pred_check_branch
      %51 = sbr.rel (0) target = $region21
    $region20: #{tpu_custom_call.1} parent=1 // pred_region
      %52 = dma.done [#allocation3], 256
    $region21: #{tpu_custom_call.1} parent=1 // pred_fallthru
      _
    // Predicated region
    $region22: #{tpu_custom_call.1} parent=1 // pred_check
      _
    $region23: #{tpu_custom_call.1} parent=1 // pred_check_branch
      %54 = sbr.rel (0) target = $region25
    $region24: #{tpu_custom_call.1} parent=1 // pred_region
      %55 = dma.done [#allocation6], 512
    $region25: #{tpu_custom_call.1} parent=1 // pred_fallthru
      _
    // Predicated region
    $region26: #{tpu_custom_call.1} parent=1 // pred_check
      _
    $region27: #{tpu_custom_call.1} parent=1 // pred_check_branch
      %57 = sbr.rel (0) target = $region29
    $region28: #{tpu_custom_call.1} parent=1 // pred_region
      %58 = dma.done [#allocation6], 512
    $region29: #{tpu_custom_call.1} parent=1 // pred_fallthru
      _
    %v60 = vld [vmem:[#allocation2] sm:$0xf]
    %v61 = vld [vmem:[#allocation2 + $0x4] sm:$0xf]
    %v62 = vld [vmem:[#allocation2 + $0x8] sm:$0xf]
    %v63 = vld [vmem:[#allocation2 + $0xc] sm:$0xf]
    %v64 = vld [vmem:[#allocation5] sm:$0xf]
    %v65 = vld [vmem:[#allocation5 + $0x4] sm:$0xf]
    %v66 = vld [vmem:[#allocation5 + $0x8] sm:$0xf]
    %v67 = vld [vmem:[#allocation5 + $0xc] sm:$0xf]
    %v68 = vld [vmem:[#allocation5 + $0x10] sm:$0xf]
    %v69 = vld [vmem:[#allocation5 + $0x14] sm:$0xf]
    %v70 = vld [vmem:[#allocation5 + $0x18] sm:$0xf]
    %v71 = vld [vmem:[#allocation5 + $0x1c] sm:$0xf]
    %v72 = vld [vmem:[#allocation7] sm:$0xf]
    %v73 = vld [vmem:[#allocation7 + $0x4] sm:$0xf]
    %v74 = vld [vmem:[#allocation7 + $0x8] sm:$0xf]
    %v75 = vld [vmem:[#allocation7 + $0xc] sm:$0xf]
    %v76 = vld [vmem:[#allocation7 + $0x10] sm:$0xf]
    %v77 = vld [vmem:[#allocation7 + $0x14] sm:$0xf]
    %v78 = vld [vmem:[#allocation7 + $0x18] sm:$0xf]
    %v79 = vld [vmem:[#allocation7 + $0x1c] sm:$0xf]
    %v84 = vunpack.c.l.b16 %v60
    %v85 = vunpack.c.l.b16 %v61
    %v86 = vunpack.c.l.b16 %v62
    %v87 = vunpack.c.l.b16 %v63
    %v88 = vpack.c.b16 %v85, %v84
    %v89 = vpack.c.b16 %v87, %v86
    %v98 = vunpack.c.l.b16 %v72
    %v99 = vunpack.c.l.b16 %v73
    %v100 = vunpack.c.l.b16 %v74
    %v101 = vunpack.c.l.b16 %v75
    %v102 = vunpack.c.l.b16 %v76
    %v103 = vunpack.c.l.b16 %v77
    %v104 = vunpack.c.l.b16 %v78
    %v105 = vunpack.c.l.b16 %v79
    %v106 = vpack.c.b16 %v99, %v98
    %v107 = vpack.c.b16 %v101, %v100
    %v108 = vpack.c.b16 %v103, %v102
    %v109 = vpack.c.b16 %v105, %v104
    %vm114 = vcmask 523264
    %v116 = vsel %vm114, %v88, 0
    %v119 = vsel %vm114, %v89, 0
    %121 = vmatprep.subr.bf16.mxu0 0
    %122 = vmatpush1.bf16.msra.mxu0 0
    %123 = vmatprep.subr.bf16.mxu0 0
    %124 = vmatpush1.bf16.msra.mxu0 0
    %125 = vmatprep.subr.bf16.mxu0 0
    %126 = vmatpush1.bf16.msra.mxu0 0
    %127 = vmatprep.subr.bf16.mxu0 0
    %128 = vmatpush1.bf16.msra.mxu0 0
    %129 = vmatprep.subr.bf16.mxu0 0
    %130 = vmatpush1.bf16.msra.mxu0 %v109
    %131 = vmatprep.subr.bf16.mxu0 0
    %132 = vmatpush1.bf16.msra.mxu0 %v108
    %133 = vmatprep.subr.bf16.mxu0 0
    %134 = vmatpush1.bf16.msra.mxu0 %v107
    %135 = vmatprep.subr.bf16.mxu0 0
    %136 = vmatpush1.bf16.msra.mxu0 %v106
    %137 = vmatprep.subr.bf16.mxu0 0
    %138 = vmatpush2.bf16.msra.mxu0 0
    %139 = vmatprep.subr.bf16.mxu0 0
    %140 = vmatpush2.bf16.msra.mxu0 0
    %141 = vmatprep.subr.bf16.mxu0 0
    %142 = vmatpush2.bf16.msra.mxu0 0
    %143 = vmatprep.subr.bf16.mxu0 0
    %144 = vmatpush2.bf16.msra.mxu0 0
    %145 = vmatprep.subr.bf16.mxu0 0
    %146 = vmatpush2.bf16.msra.mxu0 0
    %147 = vmatprep.subr.bf16.mxu0 0
    %148 = vmatpush2.bf16.msra.mxu0 0
    %149 = vmatprep.subr.bf16.mxu0 0
    %150 = vmatpush2.bf16.msra.mxu0 0
    %151 = vmatprep.subr.bf16.mxu0 0
    %152 = vmatpush2.bf16.msra.mxu0 0
    %153 = vmatprep.mubr.bf16.mxu0 0
    %154 = vmatmul.mubr.bf16.gmra.mxu0 %v116
    %v155 = vpop.f32.mrf.mxu0
    %v156 = vadd.f32 0.0, %v155
    %v157 = vpop.f32.mrf.mxu0
    %v158 = vpop.f32.mrf.mxu0
    %v159 = vadd.f32 0.0, %v158
    %v160 = vpop.f32.mrf.mxu0
    %161 = vmatprep.mubr.bf16.mxu0 0
    %162 = vmatmul.mubr.bf16.gmra.mxu0 %v119
    %v163 = vpop.f32.mrf.mxu0
    %v164 = vadd.f32 0.0, %v163
    %v165 = vpop.f32.mrf.mxu0
    %v166 = vpop.f32.mrf.mxu0
    %v167 = vadd.f32 0.0, %v166
    %v168 = vpop.f32.mrf.mxu0
    %169 = vdwg.mxu0
    %v178 = vunpack.c.l.b16 %v64
    %v179 = vunpack.c.l.b16 %v65
    %v180 = vunpack.c.l.b16 %v66
    %v181 = vunpack.c.l.b16 %v67
    %v182 = vunpack.c.l.b16 %v68
    %v183 = vunpack.c.l.b16 %v69
    %v184 = vunpack.c.l.b16 %v70
    %v185 = vunpack.c.l.b16 %v71
    %v186 = vpack.c.b16 %v179, %v178
    %v187 = vpack.c.b16 %v181, %v180
    %v188 = vpack.c.b16 %v183, %v182
    %v189 = vpack.c.b16 %v185, %v184
    %194 = vmatprep.subr.bf16.mxu0 0
    %195 = vmatpush1.bf16.msra.mxu0 0
    %196 = vmatprep.subr.bf16.mxu0 0
    %197 = vmatpush1.bf16.msra.mxu0 0
    %198 = vmatprep.subr.bf16.mxu0 0
    %199 = vmatpush1.bf16.msra.mxu0 0
    %200 = vmatprep.subr.bf16.mxu0 0
    %201 = vmatpush1.bf16.msra.mxu0 0
    %202 = vmatprep.subr.bf16.mxu0 0
    %203 = vmatpush1.bf16.msra.mxu0 %v189
    %204 = vmatprep.subr.bf16.mxu0 0
    %205 = vmatpush1.bf16.msra.mxu0 %v188
    %206 = vmatprep.subr.bf16.mxu0 0
    %207 = vmatpush1.bf16.msra.mxu0 %v187
    %208 = vmatprep.subr.bf16.mxu0 0
    %209 = vmatpush1.bf16.msra.mxu0 %v186
    %210 = vmatprep.subr.bf16.mxu0 0
    %211 = vmatpush2.bf16.msra.mxu0 0
    %212 = vmatprep.subr.bf16.mxu0 0
    %213 = vmatpush2.bf16.msra.mxu0 0
    %214 = vmatprep.subr.bf16.mxu0 0
    %215 = vmatpush2.bf16.msra.mxu0 0
    %216 = vmatprep.subr.bf16.mxu0 0
    %217 = vmatpush2.bf16.msra.mxu0 0
    %218 = vmatprep.subr.bf16.mxu0 0
    %219 = vmatpush2.bf16.msra.mxu0 0
    %220 = vmatprep.subr.bf16.mxu0 0
    %221 = vmatpush2.bf16.msra.mxu0 0
    %222 = vmatprep.subr.bf16.mxu0 0
    %223 = vmatpush2.bf16.msra.mxu0 0
    %224 = vmatprep.subr.bf16.mxu0 0
    %225 = vmatpush2.bf16.msra.mxu0 0
    %226 = vmatprep.mubr.bf16.mxu0 0
    %227 = vmatmul.mubr.bf16.gmra.mxu0 %v116
    %v228 = vpop.f32.mrf.mxu0
    %v229 = vadd.f32 %v156, %v228
    %v230 = vpop.f32.mrf.mxu0
    %v231 = vpop.f32.mrf.mxu0
    %v232 = vadd.f32 %v159, %v231
    %v233 = vpop.f32.mrf.mxu0
    %234 = vmatprep.mubr.bf16.mxu0 0
    %235 = vmatmul.mubr.bf16.gmra.mxu0 %v119
    %v236 = vpop.f32.mrf.mxu0
    %v237 = vadd.f32 %v164, %v236
    %v238 = vpop.f32.mrf.mxu0
    %v239 = vpop.f32.mrf.mxu0
    %v240 = vadd.f32 %v167, %v239
    %v241 = vpop.f32.mrf.mxu0
    %242 = vdwg.mxu0
    %v243 = vld [vmem:[%s3] sm:$0x1]
    %v245 = vlaneseq
    %v246 = vshrl.u32 %v245, 7
    %v247 = vsub.s32 0, %v246
    %v248 = vrot.slane %v243, %v247
    %v250 = vadd.f32 %v229, %v248
    %v251 = vadd.f32 %v232, %v248
    %v252 = vadd.f32 %v237, %v248
    %v253 = vadd.f32 %v240, %v248
    %254 = vmax.xlane.f32.xlu0 %v250
    %v255 = vpop.xlane.xlu0 %254
    %256 = vmax.xlane.f32.xlu0 %v251
    %v257 = vpop.xlane.xlu0 %256
    %258 = vmax.xlane.f32.xlu0 %v252
    %v259 = vpop.xlane.xlu0 %258
    %260 = vmax.xlane.f32.xlu0 %v253
    %v261 = vpop.xlane.xlu0 %260
    %v262 = vsub.f32 %v250, %v255
    %v263 = vsub.f32 %v251, %v257
    %v264 = vsub.f32 %v252, %v259
    %v265 = vsub.f32 %v253, %v261
    %v266 = vmul.f32 %v262, 1.442695
    %v267 = vpow.pop %v266
    %v268 = vmul.f32 %v263, 1.442695
    %v269 = vpow.pop %v268
    %v270 = vmul.f32 %v264, 1.442695
    %v271 = vpow.pop %v270
    %v272 = vmul.f32 %v265, 1.442695
    %v273 = vpow.pop %v272
    %274 = vadd.xlane.f32.xlu0 %v267
    %v275 = vpop.xlane.xlu0 %274
    %276 = vadd.xlane.f32.xlu0 %v269
    %v277 = vpop.xlane.xlu0 %276
    %278 = vadd.xlane.f32.xlu0 %v271
    %v279 = vpop.xlane.xlu0 %278
    %280 = vadd.xlane.f32.xlu0 %v273
    %v281 = vpop.xlane.xlu0 %280
    %v282 = vrcp.pop %v275
    %v283 = vrcp.pop %v277
    %v284 = vrcp.pop %v279
    %v285 = vrcp.pop %v281
    %v286 = vmul.f32 %v275, %v282
    %v287 = vmul.f32 %v277, %v283
    %v288 = vmul.f32 %v279, %v284
    %v289 = vmul.f32 %v281, %v285
    %v290 = vsub.f32 2.0, %v286
    %v291 = vsub.f32 2.0, %v287
    %v292 = vsub.f32 2.0, %v288
    %v293 = vsub.f32 2.0, %v289
    %v294 = vmul.f32 %v282, %v290
    %v295 = vmul.f32 %v283, %v291
    %v296 = vmul.f32 %v284, %v292
    %v297 = vmul.f32 %v285, %v293
    %v298 = vmul.f32 %v267, %v294
    %v299 = vmul.f32 %v269, %v295
    %v300 = vmul.f32 %v271, %v296
    %v301 = vmul.f32 %v273, %v297
    %302 = vst [vmem:[#allocation8] sm:$0xff] %v298
    %303 = vst [vmem:[#allocation8 + $0x8] sm:$0xff] %v299
    %304 = vst [vmem:[#allocation8 + $0x10] sm:$0xff] %v300
    %305 = vst [vmem:[#allocation8 + $0x18] sm:$0xff] %v301
    // Predicated region
    $region30: #{tpu_custom_call.1} parent=1 // pred_check
      _
    $region31: #{tpu_custom_call.1} parent=1 // pred_check_branch
      %307 = sbr.rel (0) target = $region33
    $region32: #{tpu_custom_call.1} parent=1 // pred_region
      %s309 = ssub.s32 512, 512
      %310 = vsyncadd [#allocation4], %s309
      %s311 = sshll.u32 [#allocation8], 4
      %s312 = int_to_ptr.vmem [resolvable:$true] %s311
      %317 = dma.vmem_to_hbm [thread:$0]  %s312, 512, %s4, [#allocation4], 128, 128, 8
    $region33: #{tpu_custom_call.1} parent=1 // pred_fallthru
      _
    // Predicated region
    $region34: #{tpu_custom_call.1} parent=1 // pred_check
      _
    $region35: #{tpu_custom_call.1} parent=1 // pred_check_branch
      %319 = sbr.rel (0) target = $region37
    $region36: #{tpu_custom_call.1} parent=1 // pred_region
      %320 = dma.done [#allocation4], 512
    $region37: #{tpu_custom_call.1} parent=1 // pred_fallthru
      _
    %321 = vsyncpa [#allocation3], 1
    %322 = vsyncpa [#allocation6], 1
    %323 = vsyncpa [#allocation4], 1

// kernel: tpu_custom_call.1
$region0: #{tpu_custom_call.1}
  #allocation0 [shape = 'u32[]', space=smem, size = 0x4, offset = 0x4, fixed_abs, tag = 'smem constant byte address 0x4 - core index']
  #allocation1 [shape = 'u32[144,128]{1,0:T(1,128)}', space=vmem, size = 0x12000, scoped, tag = 'internal scratch']
  %s0 = inlined_call_operand.hbm [shape: bf16[32,64], index: 0, kind: input, shape index: {}]
  %s1 = inlined_call_operand.hbm [shape: bf16[64,128], index: 1, kind: input, shape index: {}]
  %s2 = inlined_call_operand.hbm [shape: bf16[64,128], index: 2, kind: input, shape index: {}]
  %s3 = inlined_call_operand.vmem [shape: f32[1,128], index: 3, kind: input, shape index: {}]
  %s4 = inlined_call_operand.hbm [shape: f32[32,128], index: 4, kind: output, shape index: {}]
  %s5 = sld [smem:[#allocation0]]
  $region38: #{tpu_custom_call.1} parent=0
    _
  %s7 = ssub.s32 1, %s5
  %s8 = scalar_select 0, %s7, %s5
  $region1: #{tpu_custom_call.1} parent=0
    #allocation2 [shape = 'u8[8192]{0}', space=vmem, size = 0x2000, scoped, tag = 'input window, operand 0, single buffered']
    #allocation3 [shape = 's32[1]{0}', space=sflag, size = 0x4, scoped, tag = 'scoped memory for tpu_custom_call.1']
    #allocation4 [shape = 's32[1]{0}', space=sflag, size = 0x4, scoped, tag = 'scoped memory for tpu_custom_call.1']
    #allocation5 [shape = 'u8[16384]{0}', space=vmem, size = 0x4000, scoped, tag = 'input window, operand 1, single buffered']
    #allocation6 [shape = 's32[1]{0}', space=sflag, size = 0x4, scoped, tag = 'scoped memory for tpu_custom_call.1']
    #allocation7 [shape = 'u8[16384]{0}', space=vmem, size = 0x4000, scoped, tag = 'input window, operand 2, single buffered']
    #allocation8 [shape = 'u8[16384]{0}', space=vmem, size = 0x4000, scoped, tag = 'output window, operand 0, single buffered']
    %9 = vsyncpa [#allocation3], 0
    %10 = vsyncpa [#allocation6], 0
    %11 = vsyncpa [#allocation4], 0
    // Predicated region
    $region2: #{tpu_custom_call.1} parent=1 // pred_check
      _
    $region3: #{tpu_custom_call.1} parent=1 // pred_check_branch
      %13 = sbr.rel (0) target = $region5
    $region4: #{tpu_custom_call.1} parent=1 // pred_region
      %s15 = ssub.s32 256, 256
      %16 = vsyncadd [#allocation3], %s15
      %s17 = sshll.u32 [#allocation2], 4
      %s18 = int_to_ptr.vmem [resolvable:$true] %s17
      %23 = dma.hbm_to_vmem [thread:$0]  %s0, 256, %s18, [#allocation3], 64, 64, 4
    $region5: #{tpu_custom_call.1} parent=1 // pred_fallthru
      _
    // Predicated region
    $region6: #{tpu_custom_call.1} parent=1 // pred_check
      _
    $region7: #{tpu_custom_call.1} parent=1 // pred_check_branch
      %25 = sbr.rel (0) target = $region9
    $region8: #{tpu_custom_call.1} parent=1 // pred_region
      %s27 = ssub.s32 512, 512
      %28 = vsyncadd [#allocation6], %s27
      %s29 = sshll.u32 [#allocation5], 4
      %s30 = int_to_ptr.vmem [resolvable:$true] %s29
      %35 = dma.hbm_to_vmem [thread:$0]  %s1, 512, %s30, [#allocation6], 64, 64, 4
    $region9: #{tpu_custom_call.1} parent=1 // pred_fallthru
      _
    // Predicated region
    $region10: #{tpu_custom_call.1} parent=1 // pred_check
      _
    $region11: #{tpu_custom_call.1} parent=1 // pred_check_branch
      %37 = sbr.rel (0) target = $region13
    $region12: #{tpu_custom_call.1} parent=1 // pred_region
      %s39 = ssub.s32 512, 512
      %40 = vsyncadd [#allocation6], %s39
      %s41 = sshll.u32 [#allocation7], 4
      %s42 = int_to_ptr.vmem [resolvable:$true] %s41
      %47 = dma.hbm_to_vmem [thread:$0]  %s2, 512, %s42, [#allocation6], 64, 64, 4
    $region13: #{tpu_custom_call.1} parent=1 // pred_fallthru
      _
    // Predicated region
    $region14: #{tpu_custom_call.1} parent=1 // pred_check
      _
    $region15: #{tpu_custom_call.1} parent=1 // pred_check_branch
      %49 = sbr.rel (0) target = $region17
    $region16: #{tpu_custom_call.1} parent=1 // pred_region
      _
    $region17: #{tpu_custom_call.1} parent=1 // pred_fallthru
      _
    // Predicated region
    $region18: #{tpu_custom_call.1} parent=1 // pred_check
      _
    $region19: #{tpu_custom_call.1} parent=1 // pred_check_branch
      %51 = sbr.rel (0) target = $region21
    $region20: #{tpu_custom_call.1} parent=1 // pred_region
      %52 = dma.done [#allocation3], 256
    $region21: #{tpu_custom_call.1} parent=1 // pred_fallthru
      _
    // Predicated region
    $region22: #{tpu_custom_call.1} parent=1 // pred_check
      _
    $region23: #{tpu_custom_call.1} parent=1 // pred_check_branch
      %54 = sbr.rel (0) target = $region25
    $region24: #{tpu_custom_call.1} parent=1 // pred_region
      %55 = dma.done [#allocation6], 512
    $region25: #{tpu_custom_call.1} parent=1 // pred_fallthru
      _
    // Predicated region
    $region26: #{tpu_custom_call.1} parent=1 // pred_check
      _
    $region27: #{tpu_custom_call.1} parent=1 // pred_check_branch
      %57 = sbr.rel (0) target = $region29
    $region28: #{tpu_custom_call.1} parent=1 // pred_region
      %58 = dma.done [#allocation6], 512
    $region29: #{tpu_custom_call.1} parent=1 // pred_fallthru
      _
    %v60 = vld [vmem:[#allocation2] sm:$0xf]
    %v61 = vld [vmem:[#allocation2 + $0x4] sm:$0xf]
    %v62 = vld [vmem:[#allocation2 + $0x8] sm:$0xf]
    %v63 = vld [vmem:[#allocation2 + $0xc] sm:$0xf]
    %v64 = vld [vmem:[#allocation5] sm:$0xf]
    %v65 = vld [vmem:[#allocation5 + $0x4] sm:$0xf]
    %v66 = vld [vmem:[#allocation5 + $0x8] sm:$0xf]
    %v67 = vld [vmem:[#allocation5 + $0xc] sm:$0xf]
    %v68 = vld [vmem:[#allocation5 + $0x10] sm:$0xf]
    %v69 = vld [vmem:[#allocation5 + $0x14] sm:$0xf]
    %v70 = vld [vmem:[#allocation5 + $0x18] sm:$0xf]
    %v71 = vld [vmem:[#allocation5 + $0x1c] sm:$0xf]
    %v72 = vld [vmem:[#allocation7] sm:$0xf]
    %v73 = vld [vmem:[#allocation7 + $0x4] sm:$0xf]
    %v74 = vld [vmem:[#allocation7 + $0x8] sm:$0xf]
    %v75 = vld [vmem:[#allocation7 + $0xc] sm:$0xf]
    %v76 = vld [vmem:[#allocation7 + $0x10] sm:$0xf]
    %v77 = vld [vmem:[#allocation7 + $0x14] sm:$0xf]
    %v78 = vld [vmem:[#allocation7 + $0x18] sm:$0xf]
    %v79 = vld [vmem:[#allocation7 + $0x1c] sm:$0xf]
    %v84 = vunpack.c.l.b16 %v60
    %v85 = vunpack.c.l.b16 %v61
    %v86 = vunpack.c.l.b16 %v62
    %v87 = vunpack.c.l.b16 %v63
    %v88 = vpack.c.b16 %v85, %v84
    %v89 = vpack.c.b16 %v87, %v86
    %v98 = vunpack.c.l.b16 %v72
    %v99 = vunpack.c.l.b16 %v73
    %v100 = vunpack.c.l.b16 %v74
    %v101 = vunpack.c.l.b16 %v75
    %v102 = vunpack.c.l.b16 %v76
    %v103 = vunpack.c.l.b16 %v77
    %v104 = vunpack.c.l.b16 %v78
    %v105 = vunpack.c.l.b16 %v79
    %v106 = vpack.c.b16 %v99, %v98
    %v107 = vpack.c.b16 %v101, %v100
    %v108 = vpack.c.b16 %v103, %v102
    %v109 = vpack.c.b16 %v105, %v104
    %vm114 = vcmask 523264
    %v116 = vsel %vm114, %v88, 0
    %v119 = vsel %vm114, %v89, 0
    %121 = vmatprep.subr.bf16.mxu0 0
    %122 = vmatpush1.bf16.msra.mxu0 0
    %123 = vmatprep.subr.bf16.mxu0 0
    %124 = vmatpush1.bf16.msra.mxu0 0
    %125 = vmatprep.subr.bf16.mxu0 0
    %126 = vmatpush1.bf16.msra.mxu0 0
    %127 = vmatprep.subr.bf16.mxu0 0
    %128 = vmatpush1.bf16.msra.mxu0 0
    %129 = vmatprep.subr.bf16.mxu0 0
    %130 = vmatpush1.bf16.msra.mxu0 %v109
    %131 = vmatprep.subr.bf16.mxu0 0
    %132 = vmatpush1.bf16.msra.mxu0 %v108
    %133 = vmatprep.subr.bf16.mxu0 0
    %134 = vmatpush1.bf16.msra.mxu0 %v107
    %135 = vmatprep.subr.bf16.mxu0 0
    %136 = vmatpush1.bf16.msra.mxu0 %v106
    %137 = vmatprep.subr.bf16.mxu0 0
    %138 = vmatpush2.bf16.msra.mxu0 0
    %139 = vmatprep.subr.bf16.mxu0 0
    %140 = vmatpush2.bf16.msra.mxu0 0
    %141 = vmatprep.subr.bf16.mxu0 0
    %142 = vmatpush2.bf16.msra.mxu0 0
    %143 = vmatprep.subr.bf16.mxu0 0
    %144 = vmatpush2.bf16.msra.mxu0 0
    %145 = vmatprep.subr.bf16.mxu0 0
    %146 = vmatpush2.bf16.msra.mxu0 0
    %147 = vmatprep.subr.bf16.mxu0 0
    %148 = vmatpush2.bf16.msra.mxu0 0
    %149 = vmatprep.subr.bf16.mxu0 0
    %150 = vmatpush2.bf16.msra.mxu0 0
    %151 = vmatprep.subr.bf16.mxu0 0
    %152 = vmatpush2.bf16.msra.mxu0 0
    %153 = vmatprep.mubr.bf16.mxu0 0
    %154 = vmatmul.mubr.bf16.gmra.mxu0 %v116
    %v155 = vpop.f32.mrf.mxu0
    %v156 = vadd.f32 0.0, %v155
    %v157 = vpop.f32.mrf.mxu0
    %v158 = vpop.f32.mrf.mxu0
    %v159 = vadd.f32 0.0, %v158
    %v160 = vpop.f32.mrf.mxu0
    %161 = vmatprep.mubr.bf16.mxu0 0
    %162 = vmatmul.mubr.bf16.gmra.mxu0 %v119
    %v163 = vpop.f32.mrf.mxu0
    %v164 = vadd.f32 0.0, %v163
    %v165 = vpop.f32.mrf.mxu0
    %v166 = vpop.f32.mrf.mxu0
    %v167 = vadd.f32 0.0, %v166
    %v168 = vpop.f32.mrf.mxu0
    %169 = vdwg.mxu0
    %v178 = vunpack.c.l.b16 %v64
    %v179 = vunpack.c.l.b16 %v65
    %v180 = vunpack.c.l.b16 %v66
    %v181 = vunpack.c.l.b16 %v67
    %v182 = vunpack.c.l.b16 %v68
    %v183 = vunpack.c.l.b16 %v69
    %v184 = vunpack.c.l.b16 %v70
    %v185 = vunpack.c.l.b16 %v71
    %v186 = vpack.c.b16 %v179, %v178
    %v187 = vpack.c.b16 %v181, %v180
    %v188 = vpack.c.b16 %v183, %v182
    %v189 = vpack.c.b16 %v185, %v184
    %194 = vmatprep.subr.bf16.mxu0 0
    %195 = vmatpush1.bf16.msra.mxu0 0
    %196 = vmatprep.subr.bf16.mxu0 0
    %197 = vmatpush1.bf16.msra.mxu0 0
    %198 = vmatprep.subr.bf16.mxu0 0
    %199 = vmatpush1.bf16.msra.mxu0 0
    %200 = vmatprep.subr.bf16.mxu0 0
    %201 = vmatpush1.bf16.msra.mxu0 0
    %202 = vmatprep.subr.bf16.mxu0 0
    %203 = vmatpush1.bf16.msra.mxu0 %v189
    %204 = vmatprep.subr.bf16.mxu0 0
    %205 = vmatpush1.bf16.msra.mxu0 %v188
    %206 = vmatprep.subr.bf16.mxu0 0
    %207 = vmatpush1.bf16.msra.mxu0 %v187
    %208 = vmatprep.subr.bf16.mxu0 0
    %209 = vmatpush1.bf16.msra.mxu0 %v186
    %210 = vmatprep.subr.bf16.mxu0 0
    %211 = vmatpush2.bf16.msra.mxu0 0
    %212 = vmatprep.subr.bf16.mxu0 0
    %213 = vmatpush2.bf16.msra.mxu0 0
    %214 = vmatprep.subr.bf16.mxu0 0
    %215 = vmatpush2.bf16.msra.mxu0 0
    %216 = vmatprep.subr.bf16.mxu0 0
    %217 = vmatpush2.bf16.msra.mxu0 0
    %218 = vmatprep.subr.bf16.mxu0 0
    %219 = vmatpush2.bf16.msra.mxu0 0
    %220 = vmatprep.subr.bf16.mxu0 0
    %221 = vmatpush2.bf16.msra.mxu0 0
    %222 = vmatprep.subr.bf16.mxu0 0
    %223 = vmatpush2.bf16.msra.mxu0 0
    %224 = vmatprep.subr.bf16.mxu0 0
    %225 = vmatpush2.bf16.msra.mxu0 0
    %226 = vmatprep.mubr.bf16.mxu0 0
    %227 = vmatmul.mubr.bf16.gmra.mxu0 %v116
    %v228 = vpop.f32.mrf.mxu0
    %v229 = vadd.f32 %v156, %v228
    %v230 = vpop.f32.mrf.mxu0
    %v231 = vpop.f32.mrf.mxu0
    %v232 = vadd.f32 %v159, %v231
    %v233 = vpop.f32.mrf.mxu0
    %234 = vmatprep.mubr.bf16.mxu0 0
    %235 = vmatmul.mubr.bf16.gmra.mxu0 %v119
    %v236 = vpop.f32.mrf.mxu0
    %v237 = vadd.f32 %v164, %v236
    %v238 = vpop.f32.mrf.mxu0
    %v239 = vpop.f32.mrf.mxu0
    %v240 = vadd.f32 %v167, %v239
    %v241 = vpop.f32.mrf.mxu0
    %242 = vdwg.mxu0
    %v243 = vld [vmem:[%s3] sm:$0x1]
    %v245 = vlaneseq
    %v246 = vshrl.u32 %v245, 7
    %v247 = vsub.s32 0, %v246
    %v248 = vrot.slane %v243, %v247
    %v250 = vadd.f32 %v229, %v248
    %v251 = vadd.f32 %v232, %v248
    %v252 = vadd.f32 %v237, %v248
    %v253 = vadd.f32 %v240, %v248
    %254 = vmax.xlane.f32.xlu0 %v250
    %v255 = vpop.xlane.xlu0 %254
    %256 = vmax.xlane.f32.xlu0 %v251
    %v257 = vpop.xlane.xlu0 %256
    %258 = vmax.xlane.f32.xlu0 %v252
    %v259 = vpop.xlane.xlu0 %258
    %260 = vmax.xlane.f32.xlu0 %v253
    %v261 = vpop.xlane.xlu0 %260
    %v262 = vsub.f32 %v250, %v255
    %v263 = vsub.f32 %v251, %v257
    %v264 = vsub.f32 %v252, %v259
    %v265 = vsub.f32 %v253, %v261
    %v266 = vmul.f32 %v262, 1.442695
    %v267 = vpow.pop %v266
    %v268 = vmul.f32 %v263, 1.442695
    %v269 = vpow.pop %v268
    %v270 = vmul.f32 %v264, 1.442695
    %v271 = vpow.pop %v270
    %v272 = vmul.f32 %v265, 1.442695
    %v273 = vpow.pop %v272
    %274 = vadd.xlane.f32.xlu0 %v267
    %v275 = vpop.xlane.xlu0 %274
    %276 = vadd.xlane.f32.xlu0 %v269
    %v277 = vpop.xlane.xlu0 %276
    %278 = vadd.xlane.f32.xlu0 %v271
    %v279 = vpop.xlane.xlu0 %278
    %280 = vadd.xlane.f32.xlu0 %v273
    %v281 = vpop.xlane.xlu0 %280
    %v282 = vrcp.pop %v275
    %v283 = vrcp.pop %v277
    %v284 = vrcp.pop %v279
    %v285 = vrcp.pop %v281
    %v286 = vmul.f32 %v275, %v282
    %v287 = vmul.f32 %v277, %v283
    %v288 = vmul.f32 %v279, %v284
    %v289 = vmul.f32 %v281, %v285
    %v290 = vsub.f32 2.0, %v286
    %v291 = vsub.f32 2.0, %v287
    %v292 = vsub.f32 2.0, %v288
    %v293 = vsub.f32 2.0, %v289
    %v294 = vmul.f32 %v282, %v290
    %v295 = vmul.f32 %v283, %v291
    %v296 = vmul.f32 %v284, %v292
    %v297 = vmul.f32 %v285, %v293
    %v298 = vmul.f32 %v267, %v294
    %v299 = vmul.f32 %v269, %v295
    %v300 = vmul.f32 %v271, %v296
    %v301 = vmul.f32 %v273, %v297
    %302 = vst [vmem:[#allocation8] sm:$0xff] %v298
    %303 = vst [vmem:[#allocation8 + $0x8] sm:$0xff] %v299
    %304 = vst [vmem:[#allocation8 + $0x10] sm:$0xff] %v300
    %305 = vst [vmem:[#allocation8 + $0x18] sm:$0xff] %v301
    // Predicated region
    $region30: #{tpu_custom_call.1} parent=1 // pred_check
      _
    $region31: #{tpu_custom_call.1} parent=1 // pred_check_branch
      %307 = sbr.rel (0) target = $region33
    $region32: #{tpu_custom_call.1} parent=1 // pred_region
      %s309 = ssub.s32 512, 512
      %310 = vsyncadd [#allocation4], %s309
      %s311 = sshll.u32 [#allocation8], 4
      %s312 = int_to_ptr.vmem [resolvable:$true] %s311
      %317 = dma.vmem_to_hbm [thread:$0]  %s312, 512, %s4, [#allocation4], 128, 128, 8
    $region33: #{tpu_custom_call.1} parent=1 // pred_fallthru
      _
    // Predicated region
    $region34: #{tpu_custom_call.1} parent=1 // pred_check
      _
    $region35: #{tpu_custom_call.1} parent=1 // pred_check_branch
      %319 = sbr.rel (0) target = $region37
    $region36: #{tpu_custom_call.1} parent=1 // pred_region
      %320 = dma.done [#allocation4], 512
    $region37: #{tpu_custom_call.1} parent=1 // pred_fallthru
      _
    %321 = vsyncpa [#allocation3], 1
    %322 = vsyncpa [#allocation6], 1
    %323 = vsyncpa [#allocation4], 1

</llo_original>
